<compile_context>
chip_gen: v7x
topology: tpu7x:2x2x1
jax: 0.10.0
libtpu: 0.0.40
codegen_flags: <defaults>
</compile_context>

<pallas_src>
import functools

import jax
import jax.numpy as jnp
from jax.experimental import pallas as pl
from jax.experimental.pallas import tpu as pltpu

BN_EPS = 1e-5


def _round_up(x, m):
    return (x + m - 1) // m * m


def _probe_low_half_first():
    """True iff lax.bitcast_convert_type(u32 -> bf16) puts the LOW 16 bits at index 0."""
    pair = jax.device_get(jax.lax.bitcast_convert_type(
        jnp.array([0x40003F80], dtype=jnp.uint32), jnp.bfloat16))
    return float(pair[0, 0]) == 1.0          # low half 0x3F80 == bf16(1.0)


_LOW_HALF_FIRST = _probe_low_half_first()


def _choose_tile(lm, n_batch, max_tl=4096):
    """Lane tile along Lm: multiple of 128, <= 4096, trades padding vs per-step
    overhead, and prefers >= 2 grid programs so v7x's second TensorCore works."""
    lmp_full = _round_up(lm, 128)
    cands = range(128, min(lmp_full, max_tl) + 1, 128)

    def key(tl):
        lmp = _round_up(lm, tl)
        num_m = lmp // tl
        too_few = 1 if n_batch * num_m < 2 else 0
        # lmp ~ DMA bytes, 256 columns ~ fixed per-grid-step overhead
        return (too_few, lmp + 256 * num_m, -tl)

    return min(cands, key=key)


def _stats_kernel(w_ref, x_ref, s_ref, q_ref):
    """Bias-free conv tile + BN partial sums; the conv tile is NOT stored.

    w_ref: (SCp, KBp)  combined polyphase weights (compute dtype)
    x_ref: (KBp, TL)   im2col input tile          (compute dtype)
    s_ref: (SCp, 1)    f32 per-row sum of this tile
    q_ref: (SCp, 1)    f32 per-row sum of squares of this tile
    """
    y = jnp.dot(w_ref[...], x_ref[...], preferred_element_type=jnp.float32)
    s_ref[...] = jnp.sum(y, axis=1, keepdims=True)
    q_ref[...] = jnp.sum(y * y, axis=1, keepdims=True)


def _make_fused_kernel(coutp, low_half_first):
    """Conv recompute + BN scale/shift + ReLU + stride-2 phase interleave."""

    def _fused_kernel(w_ref, scale_ref, shift_ref, x_ref, o_ref):
        y = jnp.dot(w_ref[...], x_ref[...], preferred_element_type=jnp.float32)
        y = jnp.maximum(y * scale_ref[...] + shift_ref[...], 0.0)
        # Phase interleave (stride == 2): pack the two bf16 phase values of each
        # adjacent output pair into one uint32 lane; the wrapper's XLA bitcast +
        # reshape turns this into the interleaved bf16 (Cout, Lout) for free.
        y0 = y[0:coutp, :]            # even output positions (phase 0)
        y1 = y[coutp:2 * coutp, :]    # odd  output positions (phase 1)
        # f32 bits of a bf16-representable value == bf16 bits << 16 (low 16 zero)
        b0 = pltpu.bitcast(y0.astype(jnp.bfloat16).astype(jnp.float32), jnp.uint32)
        b1 = pltpu.bitcast(y1.astype(jnp.bfloat16).astype(jnp.float32), jnp.uint32)
        if low_half_first:            # index 0 of the bf16 pair <- low 16 bits
            o_ref[...] = (b0 >> 16) | b1
        else:
            o_ref[...] = (b1 >> 16) | b0

    return _fused_kernel


@functools.partial(jax.jit, static_argnames=("stride", "compute_dtype", "out_dtype"))
def conv_bnt_relu(x_ncw, weight, bias, gamma, beta, *, stride=2,
                  compute_dtype=jnp.bfloat16, out_dtype=jnp.bfloat16):
    """Forward pass of ConvBNTReLU.

    x_ncw : (N, Cin, L)      PyTorch-layout input
    weight: (Cin, Cout, ks)  nn.ConvTranspose1d weight layout
    bias  : (Cout,), gamma: (Cout,), beta: (Cout,)
    Returns (N, Cout, Lout) with Lout = (L-1)*stride - 2*pad + ks + (stride-1).
    """
    f32 = jnp.float32
    N, Cin, L = x_ncw.shape
    Cin_w, Cout, ks = weight.shape
    assert Cin_w == Cin
    pad = (ks - 1) // 2
    Lout = (L - 1) * stride - 2 * pad + ks + (stride - 1)

    # Fast path covers the EQTransformer configuration (odd ks, stride=2).
    # TODO(synk): general stride / even ks via a phase-major slab + XLA transpose fallback.
    assert stride == 2, "this kernel implements the stride=2 fast path"
    assert Lout % stride == 0, "even kernel sizes not supported by this kernel"
    Lm = Lout // stride

    # ---- polyphase tap table: y_conv[:, c, stride*m + p] += x[:, :, m + d] @ W[:, :, k]
    taps = []
    for p in range(stride):
        for k in range(ks):
            if (p + pad - k) % stride == 0:
                taps.append((p, (p + pad - k) // stride, k))
    d_min = min(d for _, d, _ in taps)
    d_max = max(d for _, d, _ in taps)
    D = d_max - d_min + 1

    Coutp = _round_up(Cout, 8)        # per-phase sublane-aligned channel block
    SCp = stride * Coutp              # phase-major row count (multiple of 8)
    KB = D * Cin
    KBp = _round_up(KB, 16)           # fused contraction dim (bf16-friendly)

    # ---- lane-dense tiling along the long (Lm) axis
    TL = _choose_tile(Lm, N)
    Lmp = _round_up(Lm, TL)
    num_m = Lmp // TL
    grid = (N, num_m)

    # ---- combined polyphase weights: row p*Coutp + c, col (d - d_min)*Cin + ci
    wc = jnp.zeros((SCp, KBp), f32)
    for p, d, k in taps:
        j = d - d_min
        wc = wc.at[p * Coutp:p * Coutp + Cout,
                   j * Cin:(j + 1) * Cin].set(weight[:, :, k].T.astype(f32))
    wc = wc.astype(compute_dtype)

    # ---- im2col input (N, KBp, Lmp), built directly in compute dtype:
    #      row j*Cin + ci, column m  ->  x[:, ci, m + d_min + j]  (zero outside [0, L))
    xc = x_ncw.astype(compute_dtype)
    pad_l = max(0, -d_min)
    pad_r = max(0, (Lm - 1 + d_max) - (L - 1))
    xp = jnp.pad(xc, ((0, 0), (0, 0), (pad_l, pad_r)))
    base = d_min + pad_l
    # TODO(synk): replace the D-fold concatenate with an in-kernel halo DMA
    # (manual make_async_copy) to avoid duplicating the input stream in HBM.
    xim = jnp.concatenate(
        [xp[:, :, base + j: base + j + Lm] for j in range(D)], axis=1)      # (N, KB, Lm)
    xim = jnp.pad(xim, ((0, 0), (0, KBp - KB), (0, Lmp - Lm)))              # (N, KBp, Lmp)

    cparams = pltpu.CompilerParams(
        dimension_semantics=("parallel", "parallel"),
        vmem_limit_bytes=32 * 1024 * 1024,
    )

    # ---- pass 1: stats only (no conv slab written)
    psum, psq = pl.pallas_call(
        _stats_kernel,
        grid_spec=pltpu.PrefetchScalarGridSpec(
            num_scalar_prefetch=0,
            grid=grid,
            in_specs=[
                pl.BlockSpec((SCp, KBp), lambda n, m: (0, 0)),
                pl.BlockSpec((None, KBp, TL), lambda n, m: (n, 0, m)),
            ],
            out_specs=(
                pl.BlockSpec((None, None, SCp, 1), lambda n, m: (n, m, 0, 0)),
                pl.BlockSpec((None, None, SCp, 1), lambda n, m: (n, m, 0, 0)),
            ),
        ),
        out_shape=(
            jax.ShapeDtypeStruct((N, num_m, SCp, 1), f32),
            jax.ShapeDtypeStruct((N, num_m, SCp, 1), f32),
        ),
        compiler_params=cparams,
    )(wc, xim)

    # ---- tiny stat combine (padded rows / columns contribute exact zeros)
    row_sum = jnp.sum(psum, axis=(0, 1))[:, 0]                       # (SCp,)
    row_sq = jnp.sum(psq, axis=(0, 1))[:, 0]
    count = float(N * Lout)
    ch_sum = row_sum.reshape(stride, Coutp)[:, :Cout].sum(axis=0)
    ch_sq = row_sq.reshape(stride, Coutp)[:, :Cout].sum(axis=0)
    mean_conv = ch_sum / count
    var = jnp.maximum(ch_sq / count - mean_conv * mean_conv, 0.0)    # biased (training mode)
    inv_std = jax.lax.rsqrt(var + BN_EPS)
    scale_c = gamma.astype(f32) * inv_std
    # ConvTranspose bias only shifts the batch mean, so it cancels exactly in BN:
    shift_c = beta.astype(f32) - mean_conv * scale_c
    scale_rows = jnp.tile(jnp.pad(scale_c, (0, Coutp - Cout)), stride).reshape(SCp, 1)
    shift_rows = jnp.tile(jnp.pad(shift_c, (0, Coutp - Cout)), stride).reshape(SCp, 1)

    # ---- pass 2: conv recompute + BN + ReLU + in-kernel phase interleave (2xbf16 -> u32)
    packed = pl.pallas_call(
        _make_fused_kernel(Coutp, _LOW_HALF_FIRST),
        grid_spec=pltpu.PrefetchScalarGridSpec(
            num_scalar_prefetch=0,
            grid=grid,
            in_specs=[
                pl.BlockSpec((SCp, KBp), lambda n, m: (0, 0)),
                pl.BlockSpec((SCp, 1), lambda n, m: (0, 0)),
                pl.BlockSpec((SCp, 1), lambda n, m: (0, 0)),
                pl.BlockSpec((None, KBp, TL), lambda n, m: (n, 0, m)),
            ],
            out_specs=pl.BlockSpec((None, Coutp, TL), lambda n, m: (n, 0, m)),
        ),
        out_shape=jax.ShapeDtypeStruct((N, Coutp, Lmp), jnp.uint32),
        compiler_params=cparams,
    )(wc, scale_rows, shift_rows, xim)

    # ---- free reinterpretation back to PyTorch layout (N, Cout, Lout)
    out_bf = jax.lax.bitcast_convert_type(packed, jnp.bfloat16)      # (N, Coutp, Lmp, 2)
    out = out_bf.reshape(N, Coutp, Lmp * stride)[:, :Cout, :Lout]
    if out_dtype != jnp.bfloat16:
        out = out.astype(out_dtype)
    return out


def reference(x_ncw, weight, bias, gamma, beta, *, stride=2):
    """Pure-JAX reference implementing the PyTorch semantics directly (scatter form)."""
    N, Cin, L = x_ncw.shape
    Cout, ks = weight.shape[1], weight.shape[2]
    pad = (ks - 1) // 2
    Lout = (L - 1) * stride - 2 * pad + ks + (stride - 1)
    y = jnp.zeros((N, Cout, Lout), jnp.float32)
    for i in range(L):
        for k in range(ks):
            t = i * stride - pad + k
            if 0 <= t < Lout:
                y = y.at[:, :, t].add(
                    jnp.einsum('nc,cd->nd', x_ncw[:, :, i], weight[:, :, k]))
    y = y + bias[None, :, None]
    mean = y.mean(axis=(0, 2), keepdims=True)
    var = ((y - mean) ** 2).mean(axis=(0, 2), keepdims=True)   # biased, like BN training
    yh = (y - mean) / jnp.sqrt(var + BN_EPS)
    return jnp.maximum(yh * gamma[None, :, None] + beta[None, :, None], 0.0)


if __name__ == "__main__":
    key = jax.random.PRNGKey(0)
    N, Cin, Cout, L, ks, stride = 2, 8, 16, 16, 3, 2
    k1, k2, k3, k4, k5 = jax.random.split(key, 5)

    x = jax.random.normal(k1, (N, Cin, L), jnp.float32)
    weight = 0.1 * jax.random.normal(k2, (Cin, Cout, ks), jnp.float32)  # ConvTranspose1d weight
    bias = 0.1 * jax.random.normal(k3, (Cout,), jnp.float32)            # ConvTranspose1d bias
    gamma = 1.0 + 0.1 * jax.random.normal(k4, (Cout,), jnp.float32)     # BN weight
    beta = 0.1 * jax.random.normal(k5, (Cout,), jnp.float32)            # BN bias

    ref = reference(x, weight, bias, gamma, beta, stride=stride)

    # f32 MXU path (output still bf16-quantized by the packed store): tighter check.
    out32 = jax.block_until_ready(
        conv_bnt_relu(x, weight, bias, gamma, beta, stride=stride,
                      compute_dtype=jnp.float32, out_dtype=jnp.float32))
    assert out32.shape == ref.shape, (out32.shape, ref.shape)
    err32 = float(jnp.max(jnp.abs(out32 - ref)))
    assert err32 < 2e-2, f"f32-compute max_err={err32}"

    # bf16 fast path (default): looser check.
    outbf = jax.block_until_ready(
        conv_bnt_relu(x, weight, bias, gamma, beta, stride=stride))
    assert outbf.shape == ref.shape, (outbf.shape, ref.shape)
    errbf = float(jnp.max(jnp.abs(outbf.astype(jnp.float32) - ref)))
    assert errbf < 5e-2, f"bf16 max_err={errbf}"

    print("KERNEL_OK")
</pallas_src>

<mosaic_0001>
module attributes {stable_mosaic.version = 11 : i64} {
  func.func @_stats_kernel(%arg0: i32, %arg1: i32, %arg2: memref<32x16xf32, #tpu.memory_space<vmem>>, %arg3: memref<1x16x128xf32, #tpu.memory_space<vmem>>, %arg4: memref<1x1x32x1xf32, #tpu.memory_space<vmem>>, %arg5: memref<1x1x32x1xf32, #tpu.memory_space<vmem>>) attributes {dimension_semantics = [#tpu.dimension_semantics<parallel>, #tpu.dimension_semantics<parallel>], iteration_bounds = array<i64: 2, 1>, scalar_prefetch = 0 : i64, scratch_operands = 0 : i64, tpu.core_type = #tpu.core_type<tc>, window_params = [{pipeline_mode = #tpu.pipeline_mode<synchronous>, transform_indices = @transform_0, window_bounds = array<i64: 32, 16>}, {transform_indices = @transform_1, window_bounds = array<i64: 1, 16, 128>}, {transform_indices = @transform_2, window_bounds = array<i64: 1, 1, 32, 1>}, {transform_indices = @transform_3, window_bounds = array<i64: 1, 1, 32, 1>}]} {
    %c0 = arith.constant 0 : index
    %c0_0 = arith.constant 0 : index
    %0 = vector.load %arg2[%c0, %c0_0] : memref<32x16xf32, #tpu.memory_space<vmem>>, vector<32x16xf32>
    %c0_1 = arith.constant 0 : index
    %c0_2 = arith.constant 0 : index
    %c0_3 = arith.constant 0 : index
    %1 = vector.load %arg3[%c0_1, %c0_2, %c0_3] : memref<1x16x128xf32, #tpu.memory_space<vmem>>, vector<1x16x128xf32>
    %2 = vector.shape_cast %1 : vector<1x16x128xf32> to vector<16x128xf32>
    %cst = arith.constant dense<0.000000e+00> : vector<32x128xf32>
    %3 = tpu.matmul %0, %2, %cst {dimension_numbers = #tpu.dot_dimension_numbers<[1], [0], [0], [1], [0, 0, 1, 1], [], []>} : vector<32x16xf32>, vector<16x128xf32>, vector<32x128xf32> -> vector<32x128xf32>
    %cst_4 = arith.constant dense<0.000000e+00> : vector<32xf32>
    %4 = vector.multi_reduction <add>, %3, %cst_4 [1] : vector<32x128xf32> to vector<32xf32>
    %5 = vector.shape_cast %4 : vector<32xf32> to vector<32x1xf32>
    %c0_5 = arith.constant 0 : index
    %c0_6 = arith.constant 0 : index
    %c0_7 = arith.constant 0 : index
    %c0_8 = arith.constant 0 : index
    %6 = vector.load %arg4[%c0_5, %c0_6, %c0_7, %c0_8] : memref<1x1x32x1xf32, #tpu.memory_space<vmem>>, vector<1x1x32x1xf32>
    %7 = vector.shape_cast %6 : vector<1x1x32x1xf32> to vector<32x1xf32>
    %8 = vector.shape_cast %5 : vector<32x1xf32> to vector<1x1x32x1xf32>
    tpu.vector_store %arg4[%c0_5, %c0_6, %c0_7, %c0_8], %8 {strides = array<i32>} : memref<1x1x32x1xf32, #tpu.memory_space<vmem>>, vector<1x1x32x1xf32>,
    %9 = arith.mulf %3, %3 : vector<32x128xf32>
    %cst_9 = arith.constant dense<0.000000e+00> : vector<32xf32>
    %10 = vector.multi_reduction <add>, %9, %cst_9 [1] : vector<32x128xf32> to vector<32xf32>
    %11 = vector.shape_cast %10 : vector<32xf32> to vector<32x1xf32>
    %c0_10 = arith.constant 0 : index
    %c0_11 = arith.constant 0 : index
    %c0_12 = arith.constant 0 : index
    %c0_13 = arith.constant 0 : index
    %12 = vector.load %arg5[%c0_10, %c0_11, %c0_12, %c0_13] : memref<1x1x32x1xf32, #tpu.memory_space<vmem>>, vector<1x1x32x1xf32>
    %13 = vector.shape_cast %12 : vector<1x1x32x1xf32> to vector<32x1xf32>
    %14 = vector.shape_cast %11 : vector<32x1xf32> to vector<1x1x32x1xf32>
    tpu.vector_store %arg5[%c0_10, %c0_11, %c0_12, %c0_13], %14 {strides = array<i32>} : memref<1x1x32x1xf32, #tpu.memory_space<vmem>>, vector<1x1x32x1xf32>,
    return
  }
  func.func @transform_0(%arg0: i32, %arg1: i32) -> (i32, i32) {
    %c0_i32 = arith.constant 0 : i32
    %c0_i32_0 = arith.constant 0 : i32
    %c0_i32_1 = arith.constant 0 : i32
    return %c0_i32, %c0_i32_0 : i32, i32
  }
  func.func @transform_1(%arg0: i32, %arg1: i32) -> (i32, i32, i32) {
    %c0_i32 = arith.constant 0 : i32
    %c0_i32_0 = arith.constant 0 : i32
    return %arg0, %c0_i32, %arg1 : i32, i32, i32
  }
  func.func @transform_2(%arg0: i32, %arg1: i32) -> (i32, i32, i32, i32) {
    %c0_i32 = arith.constant 0 : i32
    %c0_i32_0 = arith.constant 0 : i32
    %c0_i32_1 = arith.constant 0 : i32
    return %arg0, %arg1, %c0_i32, %c0_i32_0 : i32, i32, i32, i32
  }
  func.func @transform_3(%arg0: i32, %arg1: i32) -> (i32, i32, i32, i32) {
    %c0_i32 = arith.constant 0 : i32
    %c0_i32_0 = arith.constant 0 : i32
    %c0_i32_1 = arith.constant 0 : i32
    return %arg0, %arg1, %c0_i32, %c0_i32_0 : i32, i32, i32, i32
  }
}

module attributes {stable_mosaic.version = 11 : i64} {
  func.func @_fused_kernel(%arg0: i32, %arg1: i32, %arg2: memref<32x16xf32, #tpu.memory_space<vmem>>, %arg3: memref<32x1xf32, #tpu.memory_space<vmem>>, %arg4: memref<32x1xf32, #tpu.memory_space<vmem>>, %arg5: memref<1x16x128xf32, #tpu.memory_space<vmem>>, %arg6: memref<1x16x128xi32, #tpu.memory_space<vmem>>) attributes {dimension_semantics = [#tpu.dimension_semantics<parallel>, #tpu.dimension_semantics<parallel>], iteration_bounds = array<i64: 2, 1>, scalar_prefetch = 0 : i64, scratch_operands = 0 : i64, tpu.core_type = #tpu.core_type<tc>, window_params = [{pipeline_mode = #tpu.pipeline_mode<synchronous>, transform_indices = @transform_0, window_bounds = array<i64: 32, 16>}, {pipeline_mode = #tpu.pipeline_mode<synchronous>, transform_indices = @transform_1, window_bounds = array<i64: 32, 1>}, {pipeline_mode = #tpu.pipeline_mode<synchronous>, transform_indices = @transform_2, window_bounds = array<i64: 32, 1>}, {transform_indices = @transform_3, window_bounds = array<i64: 1, 16, 128>}, {transform_indices = @transform_4, window_bounds = array<i64: 1, 16, 128>}]} {
    %c0 = arith.constant 0 : index
    %c0_0 = arith.constant 0 : index
    %0 = vector.load %arg2[%c0, %c0_0] : memref<32x16xf32, #tpu.memory_space<vmem>>, vector<32x16xf32>
    %c0_1 = arith.constant 0 : index
    %c0_2 = arith.constant 0 : index
    %c0_3 = arith.constant 0 : index
    %1 = vector.load %arg5[%c0_1, %c0_2, %c0_3] : memref<1x16x128xf32, #tpu.memory_space<vmem>>, vector<1x16x128xf32>
    %2 = vector.shape_cast %1 : vector<1x16x128xf32> to vector<16x128xf32>
    %cst = arith.constant dense<0.000000e+00> : vector<32x128xf32>
    %3 = tpu.matmul %0, %2, %cst {dimension_numbers = #tpu.dot_dimension_numbers<[1], [0], [0], [1], [0, 0, 1, 1], [], []>} : vector<32x16xf32>, vector<16x128xf32>, vector<32x128xf32> -> vector<32x128xf32>
    %c0_4 = arith.constant 0 : index
    %c0_5 = arith.constant 0 : index
    %4 = vector.load %arg3[%c0_4, %c0_5] : memref<32x1xf32, #tpu.memory_space<vmem>>, vector<32x1xf32>
    %5 = vector.broadcast %4 : vector<32x1xf32> to vector<32x128xf32>
    %6 = arith.mulf %3, %5 : vector<32x128xf32>
    %c0_6 = arith.constant 0 : index
    %c0_7 = arith.constant 0 : index
    %7 = vector.load %arg4[%c0_6, %c0_7] : memref<32x1xf32, #tpu.memory_space<vmem>>, vector<32x1xf32>
    %8 = vector.broadcast %7 : vector<32x1xf32> to vector<32x128xf32>
    %9 = arith.addf %6, %8 : vector<32x128xf32>
    %cst_8 = arith.constant 0.000000e+00 : f32
    %10 = vector.broadcast %cst_8 : f32 to vector<32x128xf32>
    %11 = arith.maximumf %9, %10 : vector<32x128xf32>
    %12 = vector.extract_strided_slice %11 {offsets = [0, 0], sizes = [16, 128], strides = [1, 1]} : vector<32x128xf32> to vector<16x128xf32>
    %13 = vector.extract_strided_slice %11 {offsets = [16, 0], sizes = [16, 128], strides = [1, 1]} : vector<32x128xf32> to vector<16x128xf32>
    %14 = arith.truncf %12 : vector<16x128xf32> to vector<16x128xbf16>
    %15 = arith.extf %14 : vector<16x128xbf16> to vector<16x128xf32>
    %16 = tpu.bitcast %15 : vector<16x128xf32> -> vector<16x128xi32>
    %17 = arith.truncf %13 : vector<16x128xf32> to vector<16x128xbf16>
    %18 = arith.extf %17 : vector<16x128xbf16> to vector<16x128xf32>
    %19 = tpu.bitcast %18 : vector<16x128xf32> -> vector<16x128xi32>
    %c16_i32 = arith.constant 16 : i32
    %20 = vector.broadcast %c16_i32 : i32 to vector<16x128xi32>
    %21 = arith.shrui %16, %20 : vector<16x128xi32>
    %22 = arith.ori %21, %19 : vector<16x128xi32>
    %c0_9 = arith.constant 0 : index
    %c0_10 = arith.constant 0 : index
    %c0_11 = arith.constant 0 : index
    %23 = vector.load %arg6[%c0_9, %c0_10, %c0_11] : memref<1x16x128xi32, #tpu.memory_space<vmem>>, vector<1x16x128xi32>
    %24 = vector.shape_cast %23 : vector<1x16x128xi32> to vector<16x128xi32>
    %25 = vector.shape_cast %22 : vector<16x128xi32> to vector<1x16x128xi32>
    tpu.vector_store %arg6[%c0_9, %c0_10, %c0_11], %25 {strides = array<i32>} : memref<1x16x128xi32, #tpu.memory_space<vmem>>, vector<1x16x128xi32>,
    return
  }
  func.func @transform_0(%arg0: i32, %arg1: i32) -> (i32, i32) {
    %c0_i32 = arith.constant 0 : i32
    %c0_i32_0 = arith.constant 0 : i32
    %c0_i32_1 = arith.constant 0 : i32
    return %c0_i32, %c0_i32_0 : i32, i32
  }
  func.func @transform_1(%arg0: i32, %arg1: i32) -> (i32, i32) {
    %c0_i32 = arith.constant 0 : i32
    %c0_i32_0 = arith.constant 0 : i32
    %c0_i32_1 = arith.constant 0 : i32
    return %c0_i32, %c0_i32_0 : i32, i32
  }
  func.func @transform_2(%arg0: i32, %arg1: i32) -> (i32, i32) {
    %c0_i32 = arith.constant 0 : i32
    %c0_i32_0 = arith.constant 0 : i32
    %c0_i32_1 = arith.constant 0 : i32
    return %c0_i32, %c0_i32_0 : i32, i32
  }
  func.func @transform_3(%arg0: i32, %arg1: i32) -> (i32, i32, i32) {
    %c0_i32 = arith.constant 0 : i32
    %c0_i32_0 = arith.constant 0 : i32
    return %arg0, %c0_i32, %arg1 : i32, i32, i32
  }
  func.func @transform_4(%arg0: i32, %arg1: i32) -> (i32, i32, i32) {
    %c0_i32 = arith.constant 0 : i32
    %c0_i32_0 = arith.constant 0 : i32
    return %arg0, %c0_i32, %arg1 : i32, i32, i32
  }
}

</mosaic_0001>

<llo_original>
// kernel: squeeze.8
$region0: #{squeeze.8}
  %s0 = inlined_call_operand.vmem [shape: f32[32], index: 0, kind: input, shape index: {}]
  %s1 = inlined_call_operand.vmem [shape: f32[2,16], index: 1, kind: output, shape index: {}]
  $region1: #{squeeze.8} parent=0
    #allocation0 [shape = 'u8[4096]{0}', space=vmem, size = 0x1000, scoped, tag = 'scoped mem for output reshape']
    #allocation1 [shape = 'u8[4096]{0}', space=vmem, size = 0x1000, scoped, tag = 'scoped mem for input reshape']
    %s3 = sshllo.u32 0, 1
    %v4 = vld [vmem:[%s0] sm:%s3]
    %5 = vst [vmem:[#allocation1] sm:%s3] %v4
    %v6 = vld [vmem:[#allocation1] sm:$0x1]
    %vm7 = vcmask 130048
    %8 = vst.msk [vmem:[#allocation0] sm:$0x1] %vm7, %v6
    %v9 = vld [vmem:[#allocation1] sm:$0x1]
    %10 = vrot.lane.b32.xlu0 %v9, 112
    %v11 = vpop.permute.xlu0 %10
    %vm12 = vcmask 130048
    %s13 = scalar_lea.vmem [#allocation0], 1
    %14 = vst.msk [vmem:[%s13] sm:$0x1] %vm12, %v11
    %s16 = sshllo.u32 0, 2
    %v18 = vld [vmem:[#allocation0] sm:%s16]
    %s19 = sshllo.u32 0, 2
    %20 = vst [vmem:[%s1] sm:%s19] %v18

// kernel: tile.13
$region0: #{tile.13}
  #allocation0 [shape = 's32[1]{0}', space=sflag, size = 0x4, scoped, tag = 'scoped memory for tile.13']
  %s0 = inlined_call_operand.vmem [shape: f32[16], index: 0, kind: input, shape index: {}]
  %s1 = inlined_call_operand.vmem [shape: f32[2,16], index: 1, kind: output, shape index: {}]
  // Predicated region
  $region2: #{tile.13} parent=0 // pred_check
    _
  $region3: #{tile.13} parent=0 // pred_check_branch
    %3 = sbr.rel (0) target = $region5
  $region4: #{tile.13} parent=0 // pred_region
    _
  $region5: #{tile.13} parent=0 // pred_fallthru
    _
  %v4 = vld [vmem:[%s0] ss:$0 sm:$0xff]
  %5 = vst [vmem:[%s1] sm:$0x3] %v4

// kernel: tile.0
$region0: #{tile.0}
  %s0 = inlined_call_operand.vmem [shape: f32[2,16], index: 0, kind: input, shape index: {}]
  %s1 = inlined_call_operand.vmem [shape: f32[32,1], index: 1, kind: output, shape index: {}]
  $region1: #{tile.0} parent=0
    #allocation0 [shape = 'u8[4096]{0}', space=vmem, size = 0x1000, scoped, tag = 'scoped mem for input reshape']
    %s3 = sshllo.u32 0, 2
    %v4 = vld [vmem:[%s0] sm:%s3]
    %5 = vst [vmem:[#allocation0] sm:%s3] %v4
    %v6 = vld [vmem:[#allocation0] sm:$0x3]
    %vm7 = vcmask 7168
    %8 = vst.msk [vmem:[%s1] ss:$16 sm:$0x3] %vm7, %v6
    %v9 = vld [vmem:[#allocation0] sm:$0x3]
    %10 = vrot.lane.b32.xlu0 %v9, 127
    %v11 = vpop.permute.xlu0 %10
    %vm12 = vcmask 7168
    %s13 = scalar_lea.vmem %s1, 1
    %14 = vst.msk [vmem:[%s13] ss:$16 sm:$0x3] %vm12, %v11
    %v15 = vld [vmem:[#allocation0] sm:$0x3]
    %16 = vrot.lane.b32.xlu0 %v15, 126
    %v17 = vpop.permute.xlu0 %16
    %vm18 = vcmask 7168
    %s19 = scalar_lea.vmem %s1, 2
    %20 = vst.msk [vmem:[%s19] ss:$16 sm:$0x3] %vm18, %v17
    %v21 = vld [vmem:[#allocation0] sm:$0x3]
    %22 = vrot.lane.b32.xlu0 %v21, 125
    %v23 = vpop.permute.xlu0 %22
    %vm24 = vcmask 7168
    %s25 = scalar_lea.vmem %s1, 3
    %26 = vst.msk [vmem:[%s25] ss:$16 sm:$0x3] %vm24, %v23
    %v27 = vld [vmem:[#allocation0] sm:$0x3]
    %28 = vrot.lane.b32.xlu0 %v27, 124
    %v29 = vpop.permute.xlu0 %28
    %vm30 = vcmask 7168
    %s31 = scalar_lea.vmem %s1, 4
    %32 = vst.msk [vmem:[%s31] ss:$16 sm:$0x3] %vm30, %v29
    %v33 = vld [vmem:[#allocation0] sm:$0x3]
    %34 = vrot.lane.b32.xlu0 %v33, 123
    %v35 = vpop.permute.xlu0 %34
    %vm36 = vcmask 7168
    %s37 = scalar_lea.vmem %s1, 5
    %38 = vst.msk [vmem:[%s37] ss:$16 sm:$0x3] %vm36, %v35
    %v39 = vld [vmem:[#allocation0] sm:$0x3]
    %40 = vrot.lane.b32.xlu0 %v39, 122
    %v41 = vpop.permute.xlu0 %40
    %vm42 = vcmask 7168
    %s43 = scalar_lea.vmem %s1, 6
    %44 = vst.msk [vmem:[%s43] ss:$16 sm:$0x3] %vm42, %v41
    %v45 = vld [vmem:[#allocation0] sm:$0x3]
    %46 = vrot.lane.b32.xlu0 %v45, 121
    %v47 = vpop.permute.xlu0 %46
    %vm48 = vcmask 7168
    %s49 = scalar_lea.vmem %s1, 7
    %50 = vst.msk [vmem:[%s49] ss:$16 sm:$0x3] %vm48, %v47
    %v51 = vld [vmem:[#allocation0] sm:$0x3]
    %52 = vrot.lane.b32.xlu0 %v51, 120
    %v53 = vpop.permute.xlu0 %52
    %vm54 = vcmask 7168
    %s55 = scalar_lea.vmem %s1, 8
    %56 = vst.msk [vmem:[%s55] ss:$16 sm:$0x3] %vm54, %v53
    %v57 = vld [vmem:[#allocation0] sm:$0x3]
    %58 = vrot.lane.b32.xlu0 %v57, 119
    %v59 = vpop.permute.xlu0 %58
    %vm60 = vcmask 7168
    %s61 = scalar_lea.vmem %s1, 9
    %62 = vst.msk [vmem:[%s61] ss:$16 sm:$0x3] %vm60, %v59
    %v63 = vld [vmem:[#allocation0] sm:$0x3]
    %64 = vrot.lane.b32.xlu0 %v63, 118
    %v65 = vpop.permute.xlu0 %64
    %vm66 = vcmask 7168
    %s67 = scalar_lea.vmem %s1, 10
    %68 = vst.msk [vmem:[%s67] ss:$16 sm:$0x3] %vm66, %v65
    %v69 = vld [vmem:[#allocation0] sm:$0x3]
    %70 = vrot.lane.b32.xlu0 %v69, 117
    %v71 = vpop.permute.xlu0 %70
    %vm72 = vcmask 7168
    %s73 = scalar_lea.vmem %s1, 11
    %74 = vst.msk [vmem:[%s73] ss:$16 sm:$0x3] %vm72, %v71
    %v75 = vld [vmem:[#allocation0] sm:$0x3]
    %76 = vrot.lane.b32.xlu0 %v75, 116
    %v77 = vpop.permute.xlu0 %76
    %vm78 = vcmask 7168
    %s79 = scalar_lea.vmem %s1, 12
    %80 = vst.msk [vmem:[%s79] ss:$16 sm:$0x3] %vm78, %v77
    %v81 = vld [vmem:[#allocation0] sm:$0x3]
    %82 = vrot.lane.b32.xlu0 %v81, 115
    %v83 = vpop.permute.xlu0 %82
    %vm84 = vcmask 7168
    %s85 = scalar_lea.vmem %s1, 13
    %86 = vst.msk [vmem:[%s85] ss:$16 sm:$0x3] %vm84, %v83
    %v87 = vld [vmem:[#allocation0] sm:$0x3]
    %88 = vrot.lane.b32.xlu0 %v87, 114
    %v89 = vpop.permute.xlu0 %88
    %vm90 = vcmask 7168
    %s91 = scalar_lea.vmem %s1, 14
    %92 = vst.msk [vmem:[%s91] ss:$16 sm:$0x3] %vm90, %v89
    %v93 = vld [vmem:[#allocation0] sm:$0x3]
    %94 = vrot.lane.b32.xlu0 %v93, 113
    %v95 = vpop.permute.xlu0 %94
    %vm96 = vcmask 7168
    %s97 = scalar_lea.vmem %s1, 15
    %98 = vst.msk [vmem:[%s97] ss:$16 sm:$0x3] %vm96, %v95

// kernel: conv_bnt_relu.2
$region0: #{conv_bnt_relu.2}
  #allocation0 [shape = 'u32[]', space=smem, size = 0x4, offset = 0x4, fixed_abs, tag = 'smem constant byte address 0x4 - core index']
  #allocation1 [shape = 'u32[144,128]{1,0:T(1,128)}', space=vmem, size = 0x12000, scoped, tag = 'internal scratch']
  %s0 = inlined_call_operand.vmem [shape: f32[32,16], index: 0, kind: input, shape index: {}]
  %s1 = inlined_call_operand.vmem [shape: f32[2,16,128], index: 1, kind: input, shape index: {}]
  %s2 = inlined_call_operand.vmem [shape: f32[2,1,32,1], index: 2, kind: output, shape index: {0}]
  %s3 = inlined_call_operand.vmem [shape: f32[2,1,32,1], index: 3, kind: output, shape index: {1}]
  %4 = xla_tuple %s2, %s3
  %s5 = sld [smem:[#allocation0]]
  $region49: #{conv_bnt_relu.2} parent=0
    _
  %s7 = ssub.s32 1, %s5
  %s8 = scalar_select 0, %s7, %s5
  loop: start=0, step=1, limit=4
  $region2: #{conv_bnt_relu.2} parent=0 // loop_pre_header
    _
  $region3: #{conv_bnt_relu.2} parent=0 // loop_header
    %s10 = sphi 0, %s14
    %p11 = scmp.ge.s32.totalorder %s10, 4
    %s17 = sphi 0, %s29
    %s18 = sphi 0, %s25
    %s19 = sphi 0, %s17
    %s20 = sphi 0, %s18
    %s21 = sphi 0, %s19
    %s22 = sphi 0, %s20
    %s30 = sphi 0, %s30
    %s32 = sphi 0, %s30
    %s33 = sphi 0, %s32
    %s47 = sphi 0, %s33
    %s55 = sphi 0, %s57
    %s58 = sphi 0, %s55
    %s59 = sphi 0, %s58
    %s75 = sphi 0, %s59
    %s83 = sphi 0, %s85
    %s86 = sphi 0, %s83
    %s87 = sphi 0, %s86
    %s103 = sphi 0, %s87
    %s111 = sphi 0, %s113
    %s114 = sphi 0, %s111
    %s115 = sphi 0, %s114
    %s131 = sphi 0, %s115
  $region4: #{conv_bnt_relu.2} parent=0 // loop_header_branch
    %13 = sbr.rel (%p11) target = $region8
  $region5: #{conv_bnt_relu.2} parent=0 // loop_body
    %s15 = ssub.s32 %s10, 1
    %s16 = ssub.s32 %s10, 2
    %s23 = sadd.s32 1, %s18
    %p24 = scmp.ge.s32.totalorder %s23, 1
    %s25 = scalar_select %p24, 0, %s23
    %s26 = sadd.s32 1, %s17
    %s27 = scalar_select %p24, %s26, %s17
    %p28 = scmp.ge.s32.totalorder %s27, 2
    %s29 = scalar_select %p28, 0, %s27
    %s31 = sadd.s32 %s30, 1
    %p34 = scmp.eq.s32.totalorder %s10, 1
    %p35 = scmp.ne.s32.totalorder %s30, %s32
    %p36 = scmp.eq.s32.totalorder %s10, 0
    %p37 = por %p35, %p36
    %p38 = scmp.ne.s32.totalorder %s30, %s32
    %p39 = scmp.eq.s32.totalorder %s15, 1
    %p40 = por %p38, %p39
    %p41 = scmp.ne.s32.totalorder %s32, %s33
    %p42 = scmp.eq.s32.totalorder %s15, 0
    %p43 = por %p41, %p42
    %p44 = scmp.ne.s32.totalorder %s32, %s33
    %p45 = scmp.eq.s32.totalorder %s16, 1
    %p46 = por %p44, %p45
    %p48 = scmp.ne.s32.totalorder %s33, %s47
    %p49 = scmp.eq.s32.totalorder %s16, 0
    %p50 = por %p48, %p49
    %s51 = ssub.s32 %s17, %s29
    %s52 = ssub.s32 %s18, %s25
    %s53 = sor.u32 %s51, %s52
    %p54 = scmp.eq.s32.totalorder %s53, 0
    %s56 = sadd.s32 %s55, 1
    %s57 = scalar_select %p54, %s55, %s56
    %p60 = pneg %p54
    %p61 = scmp.eq.s32.totalorder %s10, 1
    %p62 = por %p60, %p61
    %p63 = scmp.ne.s32.totalorder %s55, %s58
    %p64 = scmp.eq.s32.totalorder %s10, 0
    %p65 = por %p63, %p64
    %p66 = scmp.ne.s32.totalorder %s55, %s58
    %p67 = scmp.eq.s32.totalorder %s15, 1
    %p68 = por %p66, %p67
    %p69 = scmp.ne.s32.totalorder %s58, %s59
    %p70 = scmp.eq.s32.totalorder %s15, 0
    %p71 = por %p69, %p70
    %p72 = scmp.ne.s32.totalorder %s58, %s59
    %p73 = scmp.eq.s32.totalorder %s16, 1
    %p74 = por %p72, %p73
    %p76 = scmp.ne.s32.totalorder %s59, %s75
    %p77 = scmp.eq.s32.totalorder %s16, 0
    %p78 = por %p76, %p77
    %s79 = ssub.s32 %s17, %s29
    %s80 = ssub.s32 %s18, %s25
    %s81 = sor.u32 %s79, %s80
    %p82 = scmp.eq.s32.totalorder %s81, 0
    %s84 = sadd.s32 %s83, 1
    %s85 = scalar_select %p82, %s83, %s84
    %p88 = pneg %p82
    %p89 = scmp.eq.s32.totalorder %s10, 1
    %p90 = por %p88, %p89
    %p91 = scmp.ne.s32.totalorder %s83, %s86
    %p92 = scmp.eq.s32.totalorder %s10, 0
    %p93 = por %p91, %p92
    %p94 = scmp.ne.s32.totalorder %s83, %s86
    %p95 = scmp.eq.s32.totalorder %s15, 1
    %p96 = por %p94, %p95
    %p97 = scmp.ne.s32.totalorder %s86, %s87
    %p98 = scmp.eq.s32.totalorder %s15, 0
    %p99 = por %p97, %p98
    %p100 = scmp.ne.s32.totalorder %s86, %s87
    %p101 = scmp.eq.s32.totalorder %s16, 1
    %p102 = por %p100, %p101
    %p104 = scmp.ne.s32.totalorder %s87, %s103
    %p105 = scmp.eq.s32.totalorder %s16, 0
    %p106 = por %p104, %p105
    %s107 = ssub.s32 %s17, %s29
    %s108 = ssub.s32 %s18, %s25
    %s109 = sor.u32 %s107, %s108
    %p110 = scmp.eq.s32.totalorder %s109, 0
    %s112 = sadd.s32 %s111, 1
    %s113 = scalar_select %p110, %s111, %s112
    %p116 = pneg %p110
    %p117 = scmp.eq.s32.totalorder %s10, 1
    %p118 = por %p116, %p117
    %p119 = scmp.ne.s32.totalorder %s111, %s114
    %p120 = scmp.eq.s32.totalorder %s10, 0
    %p121 = por %p119, %p120
    %p122 = scmp.ne.s32.totalorder %s111, %s114
    %p123 = scmp.eq.s32.totalorder %s15, 1
    %p124 = por %p122, %p123
    %p125 = scmp.ne.s32.totalorder %s114, %s115
    %p126 = scmp.eq.s32.totalorder %s15, 0
    %p127 = por %p125, %p126
    %p128 = scmp.ne.s32.totalorder %s114, %s115
    %p129 = scmp.eq.s32.totalorder %s16, 1
    %p130 = por %p128, %p129
    %p132 = scmp.ne.s32.totalorder %s115, %s131
    %p133 = scmp.eq.s32.totalorder %s16, 0
    %p134 = por %p132, %p133
    %p135 = scmp.le.s32.totalorder 1, %s10
    %p136 = scmp.lt.s32.totalorder %s10, 3
    %p137 = pnand %p135, %p136
    %p138 = pneg %p137
    // Predicated region
    $region9: #{conv_bnt_relu.2} parent=5 // pred_check
      _
    $region10: #{conv_bnt_relu.2} parent=5 // pred_check_branch
      %140 = sbr.rel (%p137) target = $region12
    $region11: #{conv_bnt_relu.2} parent=5 // pred_region
      %s141 = ssub.s32 %s10, 1
      // Predicated region
      $region13: #{conv_bnt_relu.2} parent=11 // pred_check
        %p142 = pneg %p43
      $region14: #{conv_bnt_relu.2} parent=11 // pred_check_branch
        %144 = sbr.rel (%p142) target = $region16
      $region15: #{conv_bnt_relu.2} parent=11 // pred_region
        _
      $region16: #{conv_bnt_relu.2} parent=11 // pred_fallthru
        _
    $region12: #{conv_bnt_relu.2} parent=5 // pred_fallthru
      _
    %p145 = scmp.lt.s32.totalorder %s10, 2
    // Predicated region
    $region17: #{conv_bnt_relu.2} parent=5 // pred_check
      %p146 = pneg %p145
    $region18: #{conv_bnt_relu.2} parent=5 // pred_check_branch
      %148 = sbr.rel (%p146) target = $region20
    $region19: #{conv_bnt_relu.2} parent=5 // pred_region
      // Predicated region
      $region21: #{conv_bnt_relu.2} parent=19 // pred_check
        %p149 = pneg %p65
      $region22: #{conv_bnt_relu.2} parent=19 // pred_check_branch
        %151 = sbr.rel (%p149) target = $region24
      $region23: #{conv_bnt_relu.2} parent=19 // pred_region
        %p152 = scmp.lt.s32.totalorder %s17, 1
        %s153 = scalar_select %p152, %s17, 1
        %p154 = scmp.lt.s32.totalorder %s18, 0
        %s155 = scalar_select %p154, %s18, 0
        %s156 = smul.addr %s153, 2
        %s157 = sadd.s32 %s155, %s156
        %s158 = smul.addr %s157, 8
        %s159 = scalar_lea.vmem %s1, %s158
      $region24: #{conv_bnt_relu.2} parent=19 // pred_fallthru
        _
    $region20: #{conv_bnt_relu.2} parent=5 // pred_fallthru
      _
    %p160 = scmp.le.s32.totalorder 1, %s10
    %p161 = scmp.lt.s32.totalorder %s10, 3
    %p162 = pnand %p160, %p161
    %p163 = pneg %p162
    // Predicated region
    $region25: #{conv_bnt_relu.2} parent=5 // pred_check
      _
    $region26: #{conv_bnt_relu.2} parent=5 // pred_check_branch
      %165 = sbr.rel (%p162) target = $region28
    $region27: #{conv_bnt_relu.2} parent=5 // pred_region
      %s166 = ssub.s32 %s10, 1
      %p167 = pneg %p43
      %p168 = pneg %p40
      %p169 = scmp.lt.s32.totalorder %s19, 1
      %s170 = scalar_select %p169, %s19, 1
      %p171 = scmp.lt.s32.totalorder %s20, 0
      %s172 = scalar_select %p171, %s20, 0
      %s173 = smul.addr %s170, 2
      %s174 = sadd.s32 %s172, %s173
      %s175 = smul.addr %s174, 8
      %s176 = scalar_lea.vmem %s1, %s175
      %p177 = pneg %p71
      %p178 = pneg %p68
      %p179 = pneg %p99
      %p180 = pneg %p96
      %p181 = scmp.lt.s32.totalorder %s19, 1
      %s182 = scalar_select %p181, %s19, 1
      %p183 = scmp.lt.s32.totalorder %s20, 0
      %s184 = scalar_select %p183, %s20, 0
      %s185 = smul.addr %s184, 4
      %s186 = smul.addr %s182, 4
      %s187 = sadd.s32 %s185, %s186
      %s188 = smul.addr %s187, 8
      %s189 = scalar_lea.vmem %s2, %s188
      %p190 = pneg %p127
      %p191 = pneg %p124
      %p192 = scmp.lt.s32.totalorder %s19, 1
      %s193 = scalar_select %p192, %s19, 1
      %p194 = scmp.lt.s32.totalorder %s20, 0
      %s195 = scalar_select %p194, %s20, 0
      %s196 = smul.addr %s195, 4
      %s197 = smul.addr %s193, 4
      %s198 = sadd.s32 %s196, %s197
      %s199 = smul.addr %s198, 8
      %s200 = scalar_lea.vmem %s3, %s199
      %p201 = scmp.lt.s32.totalorder %s19, 1
      %s202 = scalar_select %p201, %s19, 1
      %p203 = scmp.lt.s32.totalorder %s20, 0
      %s204 = scalar_select %p203, %s20, 0
      %s205 = smul.addr %s202, 2
      %s206 = sadd.s32 %s204, %s205
      %s207 = smul.addr %s206, 8
      %s208 = scalar_lea.vmem %s1, %s207
      %p209 = scmp.lt.s32.totalorder %s19, 1
      %s210 = scalar_select %p209, %s19, 1
      %p211 = scmp.lt.s32.totalorder %s20, 0
      %s212 = scalar_select %p211, %s20, 0
      %s213 = smul.addr %s212, 4
      %s214 = smul.addr %s210, 4
      %s215 = sadd.s32 %s213, %s214
      %s216 = smul.addr %s215, 8
      %s217 = scalar_lea.vmem %s2, %s216
      %p218 = scmp.lt.s32.totalorder %s19, 1
      %s219 = scalar_select %p218, %s19, 1
      %p220 = scmp.lt.s32.totalorder %s20, 0
      %s221 = scalar_select %p220, %s20, 0
      %s222 = smul.addr %s221, 4
      %s223 = smul.addr %s219, 4
      %s224 = sadd.s32 %s222, %s223
      %s225 = smul.addr %s224, 8
      %s226 = scalar_lea.vmem %s3, %s225
      %v227 = vld [vmem:[%s0] sm:$0xff]
      %v228 = vld [vmem:[%s0 + $0x8] sm:$0xff]
      %v229 = vld [vmem:[%s0 + $0x10] sm:$0xff]
      %v230 = vld [vmem:[%s0 + $0x18] sm:$0xff]
      %v231 = vld [vmem:[%s208] sm:$0xff]
      %v232 = vld [vmem:[%s208 + $0x8] sm:$0xff]
      %vm233 = vcmask 130048
      %v235 = vsel %vm233, %v227, 0
      %v238 = vsel %vm233, %v228, 0
      %v241 = vsel %vm233, %v229, 0
      %v244 = vsel %vm233, %v230, 0
      %246 = vmatprep.subr.mxu0 0.0
      %247 = vmatpush1.msra.mxu0 %v231
      %248 = vmatprep.subr.mxu0 0.0
      %249 = vmatpush1.msra.mxu0 %v232
      %250 = vmatprep.subr.mxu0 0.0
      %251 = vmatpush1.msra.mxu0 0.0
      %252 = vmatprep.subr.mxu0 0.0
      %253 = vmatpush1.msra.mxu0 0.0
      %254 = vmatprep.subr.mxu0 0.0
      %255 = vmatpush1.msra.mxu0 0.0
      %256 = vmatprep.subr.mxu0 0.0
      %257 = vmatpush1.msra.mxu0 0.0
      %258 = vmatprep.subr.mxu0 0.0
      %259 = vmatpush1.msra.mxu0 0.0
      %260 = vmatprep.subr.mxu0 0.0
      %261 = vmatpush1.msra.mxu0 0.0
      %262 = vmatprep.subr.mxu0 0.0
      %263 = vmatpush1.msra.mxu0 0.0
      %264 = vmatprep.subr.mxu0 0.0
      %265 = vmatpush1.msra.mxu0 0.0
      %266 = vmatprep.subr.mxu0 0.0
      %267 = vmatpush1.msra.mxu0 0.0
      %268 = vmatprep.subr.mxu0 0.0
      %269 = vmatpush1.msra.mxu0 0.0
      %270 = vmatprep.subr.mxu0 0.0
      %271 = vmatpush1.msra.mxu0 0.0
      %272 = vmatprep.subr.mxu0 0.0
      %273 = vmatpush1.msra.mxu0 0.0
      %274 = vmatprep.subr.mxu0 0.0
      %275 = vmatpush1.msra.mxu0 0.0
      %276 = vmatprep.subr.mxu0 0.0
      %277 = vmatpush1.msra.mxu0 0.0
      %278 = vmatprep.subr.mxu0 0.0
      %279 = vmatpush1.msra.mxu0 0.0
      %280 = vmatprep.subr.mxu0 0.0
      %281 = vmatpush1.msra.mxu0 0.0
      %282 = vmatprep.subr.mxu0 0.0
      %283 = vmatpush1.msra.mxu0 0.0
      %284 = vmatprep.subr.mxu0 0.0
      %285 = vmatpush1.msra.mxu0 0.0
      %286 = vmatprep.subr.mxu0 0.0
      %287 = vmatpush1.msra.mxu0 0.0
      %288 = vmatprep.subr.mxu0 0.0
      %289 = vmatpush1.msra.mxu0 0.0
      %290 = vmatprep.subr.mxu0 0.0
      %291 = vmatpush1.msra.mxu0 0.0
      %292 = vmatprep.subr.mxu0 0.0
      %293 = vmatpush1.msra.mxu0 0.0
      %294 = vmatprep.subr.mxu0 0.0
      %295 = vmatpush1.msra.mxu0 0.0
      %296 = vmatprep.subr.mxu0 0.0
      %297 = vmatpush1.msra.mxu0 0.0
      %298 = vmatprep.subr.mxu0 0.0
      %299 = vmatpush1.msra.mxu0 0.0
      %300 = vmatprep.subr.mxu0 0.0
      %301 = vmatpush1.msra.mxu0 0.0
      %302 = vmatprep.subr.mxu0 0.0
      %303 = vmatpush1.msra.mxu0 0.0
      %304 = vmatprep.subr.mxu0 0.0
      %305 = vmatpush1.msra.mxu0 0.0
      %306 = vmatprep.subr.mxu0 0.0
      %307 = vmatpush1.msra.mxu0 0.0
      %308 = vmatprep.subr.mxu0 0.0
      %309 = vmatpush1.msra.mxu0 0.0
      %310 = vmatprep.mubr.f32.mxu0 0.0
      %311 = vmatmul.mubr.f32.gmra.mrb[0].mxu0 %v235
      %v312 = vpop.f32.mrb[0].mxu0
      %v313 = vadd.f32 0.0, %v312
      %v314 = vpop.f32.mrb[0].mxu0
      %315 = vmatprep.mubr.f32.mxu0 0.0
      %316 = vmatmul.mubr.f32.gmra.mrb[0].mxu0 %v238
      %v317 = vpop.f32.mrb[0].mxu0
      %v318 = vadd.f32 0.0, %v317
      %v319 = vpop.f32.mrb[0].mxu0
      %320 = vmatprep.mubr.f32.mxu0 0.0
      %321 = vmatmul.mubr.f32.gmra.mrb[0].mxu0 %v241
      %v322 = vpop.f32.mrb[0].mxu0
      %v323 = vadd.f32 0.0, %v322
      %v324 = vpop.f32.mrb[0].mxu0
      %325 = vmatprep.mubr.f32.mxu0 0.0
      %326 = vmatmul.mubr.f32.gmra.mrb[0].mxu0 %v244
      %v327 = vpop.f32.mrb[0].mxu0
      %v328 = vadd.f32 0.0, %v327
      %v329 = vpop.f32.mrb[0].mxu0
      %330 = vdwg.mxu0
      %331 = vadd.xlane.f32.xlu0 %v313
      %v332 = vpop.xlane.xlu0 %331
      %333 = vadd.xlane.f32.xlu0 %v318
      %v334 = vpop.xlane.xlu0 %333
      %335 = vadd.xlane.f32.xlu0 %v323
      %v336 = vpop.xlane.xlu0 %335
      %337 = vadd.xlane.f32.xlu0 %v328
      %v338 = vpop.xlane.xlu0 %337
      %vm339 = vcmask 7168
      %340 = vst.msk [vmem:[%s217] sm:$0xff] %vm339, %v332
      %341 = vst.msk [vmem:[%s217 + $0x8] sm:$0xff] %vm339, %v334
      %342 = vst.msk [vmem:[%s217 + $0x10] sm:$0xff] %vm339, %v336
      %343 = vst.msk [vmem:[%s217 + $0x18] sm:$0xff] %vm339, %v338
      %v344 = vmul.f32 %v313, %v313
      %v345 = vmul.f32 %v318, %v318
      %v346 = vmul.f32 %v323, %v323
      %v347 = vmul.f32 %v328, %v328
      %348 = vadd.xlane.f32.xlu0 %v344
      %v349 = vpop.xlane.xlu0 %348
      %350 = vadd.xlane.f32.xlu0 %v345
      %v351 = vpop.xlane.xlu0 %350
      %352 = vadd.xlane.f32.xlu0 %v346
      %v353 = vpop.xlane.xlu0 %352
      %354 = vadd.xlane.f32.xlu0 %v347
      %v355 = vpop.xlane.xlu0 %354
      %356 = vst.msk [vmem:[%s226] sm:$0xff] %vm339, %v349
      %357 = vst.msk [vmem:[%s226 + $0x8] sm:$0xff] %vm339, %v351
      %358 = vst.msk [vmem:[%s226 + $0x10] sm:$0xff] %vm339, %v353
      %359 = vst.msk [vmem:[%s226 + $0x18] sm:$0xff] %vm339, %v355
      %p360 = scmp.lt.s32.totalorder %s19, 1
      %s361 = scalar_select %p360, %s19, 1
      %p362 = scmp.lt.s32.totalorder %s20, 0
      %s363 = scalar_select %p362, %s20, 0
      %s364 = smul.addr %s363, 4
      %s365 = smul.addr %s361, 4
      %s366 = sadd.s32 %s364, %s365
      %s367 = smul.addr %s366, 8
      %s368 = scalar_lea.vmem %s2, %s367
      %p369 = scmp.lt.s32.totalorder %s19, 1
      %s370 = scalar_select %p369, %s19, 1
      %p371 = scmp.lt.s32.totalorder %s20, 0
      %s372 = scalar_select %p371, %s20, 0
      %s373 = smul.addr %s372, 4
      %s374 = smul.addr %s370, 4
      %s375 = sadd.s32 %s373, %s374
      %s376 = smul.addr %s375, 8
      %s377 = scalar_lea.vmem %s3, %s376
      // Predicated region
      $region29: #{conv_bnt_relu.2} parent=27 // pred_check
        %p378 = pneg %p96
      $region30: #{conv_bnt_relu.2} parent=27 // pred_check_branch
        %380 = sbr.rel (%p378) target = $region32
      $region31: #{conv_bnt_relu.2} parent=27 // pred_region
        _
      $region32: #{conv_bnt_relu.2} parent=27 // pred_fallthru
        _
      // Predicated region
      $region33: #{conv_bnt_relu.2} parent=27 // pred_check
        %p381 = pneg %p124
      $region34: #{conv_bnt_relu.2} parent=27 // pred_check_branch
        %383 = sbr.rel (%p381) target = $region36
      $region35: #{conv_bnt_relu.2} parent=27 // pred_region
        _
      $region36: #{conv_bnt_relu.2} parent=27 // pred_fallthru
        _
    $region28: #{conv_bnt_relu.2} parent=5 // pred_fallthru
      _
    %p384 = scmp.le.s32.totalorder 2, %s10
    // Predicated region
    $region37: #{conv_bnt_relu.2} parent=5 // pred_check
      %p385 = pneg %p384
    $region38: #{conv_bnt_relu.2} parent=5 // pred_check_branch
      %387 = sbr.rel (%p385) target = $region40
    $region39: #{conv_bnt_relu.2} parent=5 // pred_region
      %s388 = ssub.s32 %s10, 2
      // Predicated region
      $region41: #{conv_bnt_relu.2} parent=39 // pred_check
        %p389 = pneg %p102
      $region42: #{conv_bnt_relu.2} parent=39 // pred_check_branch
        %391 = sbr.rel (%p389) target = $region44
      $region43: #{conv_bnt_relu.2} parent=39 // pred_region
        %p392 = scmp.lt.s32.totalorder %s21, 1
        %s393 = scalar_select %p392, %s21, 1
        %p394 = scmp.lt.s32.totalorder %s22, 0
        %s395 = scalar_select %p394, %s22, 0
        %s396 = smul.addr %s395, 4
        %s397 = smul.addr %s393, 4
        %s398 = sadd.s32 %s396, %s397
        %s399 = smul.addr %s398, 8
        %s400 = scalar_lea.vmem %s2, %s399
      $region44: #{conv_bnt_relu.2} parent=39 // pred_fallthru
        _
      // Predicated region
      $region45: #{conv_bnt_relu.2} parent=39 // pred_check
        %p401 = pneg %p130
      $region46: #{conv_bnt_relu.2} parent=39 // pred_check_branch
        %403 = sbr.rel (%p401) target = $region48
      $region47: #{conv_bnt_relu.2} parent=39 // pred_region
        %p404 = scmp.lt.s32.totalorder %s21, 1
        %s405 = scalar_select %p404, %s21, 1
        %p406 = scmp.lt.s32.totalorder %s22, 0
        %s407 = scalar_select %p406, %s22, 0
        %s408 = smul.addr %s407, 4
        %s409 = smul.addr %s405, 4
        %s410 = sadd.s32 %s408, %s409
        %s411 = smul.addr %s410, 8
        %s412 = scalar_lea.vmem %s3, %s411
      $region48: #{conv_bnt_relu.2} parent=39 // pred_fallthru
        _
    $region40: #{conv_bnt_relu.2} parent=5 // pred_fallthru
      _
  $region6: #{conv_bnt_relu.2} parent=0 // loop_footer
    %s14 = sadd.s32 1, %s10
  $region7: #{conv_bnt_relu.2} parent=0 // loop_footer_branch
    %9 = sbr.rel target = $region3
  $region8: #{conv_bnt_relu.2} parent=0 // loop_exit
    _

// kernel: conv_bnt_relu.3
$region0: #{conv_bnt_relu.3}
  #allocation0 [shape = 'u32[]', space=smem, size = 0x4, offset = 0x4, fixed_abs, tag = 'smem constant byte address 0x4 - core index']
  #allocation1 [shape = 'u32[144,128]{1,0:T(1,128)}', space=vmem, size = 0x12000, scoped, tag = 'internal scratch']
  %s0 = inlined_call_operand.vmem [shape: f32[32,16], index: 0, kind: input, shape index: {}]
  %s1 = inlined_call_operand.vmem [shape: f32[32,1], index: 1, kind: input, shape index: {}]
  %s2 = inlined_call_operand.vmem [shape: f32[32,1], index: 2, kind: input, shape index: {}]
  %s3 = inlined_call_operand.vmem [shape: f32[2,16,128], index: 3, kind: input, shape index: {}]
  %s4 = inlined_call_operand.vmem [shape: u32[2,16,128], index: 4, kind: output, shape index: {}]
  %s5 = sld [smem:[#allocation0]]
  $region49: #{conv_bnt_relu.3} parent=0
    _
  %s7 = ssub.s32 1, %s5
  %s8 = scalar_select 0, %s7, %s5
  loop: start=0, step=1, limit=4
  $region2: #{conv_bnt_relu.3} parent=0 // loop_pre_header
    _
  $region3: #{conv_bnt_relu.3} parent=0 // loop_header
    %s10 = sphi 0, %s14
    %p11 = scmp.ge.s32.totalorder %s10, 4
    %s17 = sphi 0, %s29
    %s18 = sphi 0, %s25
    %s19 = sphi 0, %s17
    %s20 = sphi 0, %s18
    %s21 = sphi 0, %s19
    %s22 = sphi 0, %s20
    %s30 = sphi 0, %s30
    %s32 = sphi 0, %s30
    %s33 = sphi 0, %s32
    %s47 = sphi 0, %s33
    %s51 = sphi 0, %s51
    %s53 = sphi 0, %s51
    %s54 = sphi 0, %s53
    %s68 = sphi 0, %s54
    %s72 = sphi 0, %s72
    %s74 = sphi 0, %s72
    %s75 = sphi 0, %s74
    %s89 = sphi 0, %s75
    %s97 = sphi 0, %s99
    %s100 = sphi 0, %s97
    %s101 = sphi 0, %s100
    %s117 = sphi 0, %s101
    %s125 = sphi 0, %s127
    %s128 = sphi 0, %s125
    %s129 = sphi 0, %s128
    %s145 = sphi 0, %s129
  $region4: #{conv_bnt_relu.3} parent=0 // loop_header_branch
    %13 = sbr.rel (%p11) target = $region8
  $region5: #{conv_bnt_relu.3} parent=0 // loop_body
    %s15 = ssub.s32 %s10, 1
    %s16 = ssub.s32 %s10, 2
    %s23 = sadd.s32 1, %s18
    %p24 = scmp.ge.s32.totalorder %s23, 1
    %s25 = scalar_select %p24, 0, %s23
    %s26 = sadd.s32 1, %s17
    %s27 = scalar_select %p24, %s26, %s17
    %p28 = scmp.ge.s32.totalorder %s27, 2
    %s29 = scalar_select %p28, 0, %s27
    %s31 = sadd.s32 %s30, 1
    %p34 = scmp.eq.s32.totalorder %s10, 1
    %p35 = scmp.ne.s32.totalorder %s30, %s32
    %p36 = scmp.eq.s32.totalorder %s10, 0
    %p37 = por %p35, %p36
    %p38 = scmp.ne.s32.totalorder %s30, %s32
    %p39 = scmp.eq.s32.totalorder %s15, 1
    %p40 = por %p38, %p39
    %p41 = scmp.ne.s32.totalorder %s32, %s33
    %p42 = scmp.eq.s32.totalorder %s15, 0
    %p43 = por %p41, %p42
    %p44 = scmp.ne.s32.totalorder %s32, %s33
    %p45 = scmp.eq.s32.totalorder %s16, 1
    %p46 = por %p44, %p45
    %p48 = scmp.ne.s32.totalorder %s33, %s47
    %p49 = scmp.eq.s32.totalorder %s16, 0
    %p50 = por %p48, %p49
    %s52 = sadd.s32 %s51, 1
    %p55 = scmp.eq.s32.totalorder %s10, 1
    %p56 = scmp.ne.s32.totalorder %s51, %s53
    %p57 = scmp.eq.s32.totalorder %s10, 0
    %p58 = por %p56, %p57
    %p59 = scmp.ne.s32.totalorder %s51, %s53
    %p60 = scmp.eq.s32.totalorder %s15, 1
    %p61 = por %p59, %p60
    %p62 = scmp.ne.s32.totalorder %s53, %s54
    %p63 = scmp.eq.s32.totalorder %s15, 0
    %p64 = por %p62, %p63
    %p65 = scmp.ne.s32.totalorder %s53, %s54
    %p66 = scmp.eq.s32.totalorder %s16, 1
    %p67 = por %p65, %p66
    %p69 = scmp.ne.s32.totalorder %s54, %s68
    %p70 = scmp.eq.s32.totalorder %s16, 0
    %p71 = por %p69, %p70
    %s73 = sadd.s32 %s72, 1
    %p76 = scmp.eq.s32.totalorder %s10, 1
    %p77 = scmp.ne.s32.totalorder %s72, %s74
    %p78 = scmp.eq.s32.totalorder %s10, 0
    %p79 = por %p77, %p78
    %p80 = scmp.ne.s32.totalorder %s72, %s74
    %p81 = scmp.eq.s32.totalorder %s15, 1
    %p82 = por %p80, %p81
    %p83 = scmp.ne.s32.totalorder %s74, %s75
    %p84 = scmp.eq.s32.totalorder %s15, 0
    %p85 = por %p83, %p84
    %p86 = scmp.ne.s32.totalorder %s74, %s75
    %p87 = scmp.eq.s32.totalorder %s16, 1
    %p88 = por %p86, %p87
    %p90 = scmp.ne.s32.totalorder %s75, %s89
    %p91 = scmp.eq.s32.totalorder %s16, 0
    %p92 = por %p90, %p91
    %s93 = ssub.s32 %s17, %s29
    %s94 = ssub.s32 %s18, %s25
    %s95 = sor.u32 %s93, %s94
    %p96 = scmp.eq.s32.totalorder %s95, 0
    %s98 = sadd.s32 %s97, 1
    %s99 = scalar_select %p96, %s97, %s98
    %p102 = pneg %p96
    %p103 = scmp.eq.s32.totalorder %s10, 1
    %p104 = por %p102, %p103
    %p105 = scmp.ne.s32.totalorder %s97, %s100
    %p106 = scmp.eq.s32.totalorder %s10, 0
    %p107 = por %p105, %p106
    %p108 = scmp.ne.s32.totalorder %s97, %s100
    %p109 = scmp.eq.s32.totalorder %s15, 1
    %p110 = por %p108, %p109
    %p111 = scmp.ne.s32.totalorder %s100, %s101
    %p112 = scmp.eq.s32.totalorder %s15, 0
    %p113 = por %p111, %p112
    %p114 = scmp.ne.s32.totalorder %s100, %s101
    %p115 = scmp.eq.s32.totalorder %s16, 1
    %p116 = por %p114, %p115
    %p118 = scmp.ne.s32.totalorder %s101, %s117
    %p119 = scmp.eq.s32.totalorder %s16, 0
    %p120 = por %p118, %p119
    %s121 = ssub.s32 %s17, %s29
    %s122 = ssub.s32 %s18, %s25
    %s123 = sor.u32 %s121, %s122
    %p124 = scmp.eq.s32.totalorder %s123, 0
    %s126 = sadd.s32 %s125, 1
    %s127 = scalar_select %p124, %s125, %s126
    %p130 = pneg %p124
    %p131 = scmp.eq.s32.totalorder %s10, 1
    %p132 = por %p130, %p131
    %p133 = scmp.ne.s32.totalorder %s125, %s128
    %p134 = scmp.eq.s32.totalorder %s10, 0
    %p135 = por %p133, %p134
    %p136 = scmp.ne.s32.totalorder %s125, %s128
    %p137 = scmp.eq.s32.totalorder %s15, 1
    %p138 = por %p136, %p137
    %p139 = scmp.ne.s32.totalorder %s128, %s129
    %p140 = scmp.eq.s32.totalorder %s15, 0
    %p141 = por %p139, %p140
    %p142 = scmp.ne.s32.totalorder %s128, %s129
    %p143 = scmp.eq.s32.totalorder %s16, 1
    %p144 = por %p142, %p143
    %p146 = scmp.ne.s32.totalorder %s129, %s145
    %p147 = scmp.eq.s32.totalorder %s16, 0
    %p148 = por %p146, %p147
    %p149 = scmp.le.s32.totalorder 1, %s10
    %p150 = scmp.lt.s32.totalorder %s10, 3
    %p151 = pnand %p149, %p150
    %p152 = pneg %p151
    // Predicated region
    $region9: #{conv_bnt_relu.3} parent=5 // pred_check
      _
    $region10: #{conv_bnt_relu.3} parent=5 // pred_check_branch
      %154 = sbr.rel (%p151) target = $region12
    $region11: #{conv_bnt_relu.3} parent=5 // pred_region
      %s155 = ssub.s32 %s10, 1
      // Predicated region
      $region13: #{conv_bnt_relu.3} parent=11 // pred_check
        %p156 = pneg %p43
      $region14: #{conv_bnt_relu.3} parent=11 // pred_check_branch
        %158 = sbr.rel (%p156) target = $region16
      $region15: #{conv_bnt_relu.3} parent=11 // pred_region
        _
      $region16: #{conv_bnt_relu.3} parent=11 // pred_fallthru
        _
      // Predicated region
      $region17: #{conv_bnt_relu.3} parent=11 // pred_check
        %p159 = pneg %p64
      $region18: #{conv_bnt_relu.3} parent=11 // pred_check_branch
        %161 = sbr.rel (%p159) target = $region20
      $region19: #{conv_bnt_relu.3} parent=11 // pred_region
        _
      $region20: #{conv_bnt_relu.3} parent=11 // pred_fallthru
        _
      // Predicated region
      $region21: #{conv_bnt_relu.3} parent=11 // pred_check
        %p162 = pneg %p85
      $region22: #{conv_bnt_relu.3} parent=11 // pred_check_branch
        %164 = sbr.rel (%p162) target = $region24
      $region23: #{conv_bnt_relu.3} parent=11 // pred_region
        _
      $region24: #{conv_bnt_relu.3} parent=11 // pred_fallthru
        _
    $region12: #{conv_bnt_relu.3} parent=5 // pred_fallthru
      _
    %p165 = scmp.lt.s32.totalorder %s10, 2
    // Predicated region
    $region25: #{conv_bnt_relu.3} parent=5 // pred_check
      %p166 = pneg %p165
    $region26: #{conv_bnt_relu.3} parent=5 // pred_check_branch
      %168 = sbr.rel (%p166) target = $region28
    $region27: #{conv_bnt_relu.3} parent=5 // pred_region
      // Predicated region
      $region29: #{conv_bnt_relu.3} parent=27 // pred_check
        %p169 = pneg %p107
      $region30: #{conv_bnt_relu.3} parent=27 // pred_check_branch
        %171 = sbr.rel (%p169) target = $region32
      $region31: #{conv_bnt_relu.3} parent=27 // pred_region
        %p172 = scmp.lt.s32.totalorder %s17, 1
        %s173 = scalar_select %p172, %s17, 1
        %p174 = scmp.lt.s32.totalorder %s18, 0
        %s175 = scalar_select %p174, %s18, 0
        %s176 = smul.addr %s173, 2
        %s177 = sadd.s32 %s175, %s176
        %s178 = smul.addr %s177, 8
        %s179 = scalar_lea.vmem %s3, %s178
      $region32: #{conv_bnt_relu.3} parent=27 // pred_fallthru
        _
    $region28: #{conv_bnt_relu.3} parent=5 // pred_fallthru
      _
    %p180 = scmp.le.s32.totalorder 1, %s10
    %p181 = scmp.lt.s32.totalorder %s10, 3
    %p182 = pnand %p180, %p181
    %p183 = pneg %p182
    // Predicated region
    $region33: #{conv_bnt_relu.3} parent=5 // pred_check
      _
    $region34: #{conv_bnt_relu.3} parent=5 // pred_check_branch
      %185 = sbr.rel (%p182) target = $region36
    $region35: #{conv_bnt_relu.3} parent=5 // pred_region
      %s186 = ssub.s32 %s10, 1
      %p187 = pneg %p43
      %p188 = pneg %p40
      %p189 = pneg %p64
      %p190 = pneg %p61
      %p191 = pneg %p85
      %p192 = pneg %p82
      %p193 = scmp.lt.s32.totalorder %s19, 1
      %s194 = scalar_select %p193, %s19, 1
      %p195 = scmp.lt.s32.totalorder %s20, 0
      %s196 = scalar_select %p195, %s20, 0
      %s197 = smul.addr %s194, 2
      %s198 = sadd.s32 %s196, %s197
      %s199 = smul.addr %s198, 8
      %s200 = scalar_lea.vmem %s3, %s199
      %p201 = pneg %p113
      %p202 = pneg %p110
      %p203 = pneg %p141
      %p204 = pneg %p138
      %p205 = scmp.lt.s32.totalorder %s19, 1
      %s206 = scalar_select %p205, %s19, 1
      %p207 = scmp.lt.s32.totalorder %s20, 0
      %s208 = scalar_select %p207, %s20, 0
      %s209 = smul.addr %s206, 2
      %s210 = sadd.s32 %s208, %s209
      %s211 = smul.addr %s210, 8
      %s212 = scalar_lea.vmem %s4, %s211
      %p213 = scmp.lt.s32.totalorder %s19, 1
      %s214 = scalar_select %p213, %s19, 1
      %p215 = scmp.lt.s32.totalorder %s20, 0
      %s216 = scalar_select %p215, %s20, 0
      %s217 = smul.addr %s214, 2
      %s218 = sadd.s32 %s216, %s217
      %s219 = smul.addr %s218, 8
      %s220 = scalar_lea.vmem %s3, %s219
      %p221 = scmp.lt.s32.totalorder %s19, 1
      %s222 = scalar_select %p221, %s19, 1
      %p223 = scmp.lt.s32.totalorder %s20, 0
      %s224 = scalar_select %p223, %s20, 0
      %s225 = smul.addr %s222, 2
      %s226 = sadd.s32 %s224, %s225
      %s227 = smul.addr %s226, 8
      %s228 = scalar_lea.vmem %s4, %s227
      %v229 = vld [vmem:[%s0] sm:$0xff]
      %v230 = vld [vmem:[%s0 + $0x8] sm:$0xff]
      %v231 = vld [vmem:[%s0 + $0x10] sm:$0xff]
      %v232 = vld [vmem:[%s0 + $0x18] sm:$0xff]
      %v233 = vld [vmem:[%s220] sm:$0xff]
      %v234 = vld [vmem:[%s220 + $0x8] sm:$0xff]
      %vm235 = vcmask 130048
      %v237 = vsel %vm235, %v229, 0
      %v240 = vsel %vm235, %v230, 0
      %v243 = vsel %vm235, %v231, 0
      %v246 = vsel %vm235, %v232, 0
      %248 = vmatprep.subr.mxu0 0.0
      %249 = vmatpush1.msra.mxu0 %v233
      %250 = vmatprep.subr.mxu0 0.0
      %251 = vmatpush1.msra.mxu0 %v234
      %252 = vmatprep.subr.mxu0 0.0
      %253 = vmatpush1.msra.mxu0 0.0
      %254 = vmatprep.subr.mxu0 0.0
      %255 = vmatpush1.msra.mxu0 0.0
      %256 = vmatprep.subr.mxu0 0.0
      %257 = vmatpush1.msra.mxu0 0.0
      %258 = vmatprep.subr.mxu0 0.0
      %259 = vmatpush1.msra.mxu0 0.0
      %260 = vmatprep.subr.mxu0 0.0
      %261 = vmatpush1.msra.mxu0 0.0
      %262 = vmatprep.subr.mxu0 0.0
      %263 = vmatpush1.msra.mxu0 0.0
      %264 = vmatprep.subr.mxu0 0.0
      %265 = vmatpush1.msra.mxu0 0.0
      %266 = vmatprep.subr.mxu0 0.0
      %267 = vmatpush1.msra.mxu0 0.0
      %268 = vmatprep.subr.mxu0 0.0
      %269 = vmatpush1.msra.mxu0 0.0
      %270 = vmatprep.subr.mxu0 0.0
      %271 = vmatpush1.msra.mxu0 0.0
      %272 = vmatprep.subr.mxu0 0.0
      %273 = vmatpush1.msra.mxu0 0.0
      %274 = vmatprep.subr.mxu0 0.0
      %275 = vmatpush1.msra.mxu0 0.0
      %276 = vmatprep.subr.mxu0 0.0
      %277 = vmatpush1.msra.mxu0 0.0
      %278 = vmatprep.subr.mxu0 0.0
      %279 = vmatpush1.msra.mxu0 0.0
      %280 = vmatprep.subr.mxu0 0.0
      %281 = vmatpush1.msra.mxu0 0.0
      %282 = vmatprep.subr.mxu0 0.0
      %283 = vmatpush1.msra.mxu0 0.0
      %284 = vmatprep.subr.mxu0 0.0
      %285 = vmatpush1.msra.mxu0 0.0
      %286 = vmatprep.subr.mxu0 0.0
      %287 = vmatpush1.msra.mxu0 0.0
      %288 = vmatprep.subr.mxu0 0.0
      %289 = vmatpush1.msra.mxu0 0.0
      %290 = vmatprep.subr.mxu0 0.0
      %291 = vmatpush1.msra.mxu0 0.0
      %292 = vmatprep.subr.mxu0 0.0
      %293 = vmatpush1.msra.mxu0 0.0
      %294 = vmatprep.subr.mxu0 0.0
      %295 = vmatpush1.msra.mxu0 0.0
      %296 = vmatprep.subr.mxu0 0.0
      %297 = vmatpush1.msra.mxu0 0.0
      %298 = vmatprep.subr.mxu0 0.0
      %299 = vmatpush1.msra.mxu0 0.0
      %300 = vmatprep.subr.mxu0 0.0
      %301 = vmatpush1.msra.mxu0 0.0
      %302 = vmatprep.subr.mxu0 0.0
      %303 = vmatpush1.msra.mxu0 0.0
      %304 = vmatprep.subr.mxu0 0.0
      %305 = vmatpush1.msra.mxu0 0.0
      %306 = vmatprep.subr.mxu0 0.0
      %307 = vmatpush1.msra.mxu0 0.0
      %308 = vmatprep.subr.mxu0 0.0
      %309 = vmatpush1.msra.mxu0 0.0
      %310 = vmatprep.subr.mxu0 0.0
      %311 = vmatpush1.msra.mxu0 0.0
      %312 = vmatprep.mubr.f32.mxu0 0.0
      %313 = vmatmul.mubr.f32.gmra.mrb[0].mxu0 %v237
      %v314 = vpop.f32.mrb[0].mxu0
      %v315 = vadd.f32 0.0, %v314
      %v316 = vpop.f32.mrb[0].mxu0
      %317 = vmatprep.mubr.f32.mxu0 0.0
      %318 = vmatmul.mubr.f32.gmra.mrb[0].mxu0 %v240
      %v319 = vpop.f32.mrb[0].mxu0
      %v320 = vadd.f32 0.0, %v319
      %v321 = vpop.f32.mrb[0].mxu0
      %322 = vmatprep.mubr.f32.mxu0 0.0
      %323 = vmatmul.mubr.f32.gmra.mrb[0].mxu0 %v243
      %v324 = vpop.f32.mrb[0].mxu0
      %v325 = vadd.f32 0.0, %v324
      %v326 = vpop.f32.mrb[0].mxu0
      %327 = vmatprep.mubr.f32.mxu0 0.0
      %328 = vmatmul.mubr.f32.gmra.mrb[0].mxu0 %v246
      %v329 = vpop.f32.mrb[0].mxu0
      %v330 = vadd.f32 0.0, %v329
      %v331 = vpop.f32.mrb[0].mxu0
      %332 = vdwg.mxu0
      %v333 = vld [vmem:[%s1] sm:$0xff]
      %v334 = vld [vmem:[%s1 + $0x8] sm:$0xff]
      %v335 = vld [vmem:[%s1 + $0x10] sm:$0xff]
      %v336 = vld [vmem:[%s1 + $0x18] sm:$0xff]
      %338 = vset.pattern.permute.xlu0 0
      %339 = vperm.xlu0 %338, %v333
      %v340 = vpop.permute.xlu0 %339
      %343 = vset.pattern.permute.xlu0 0
      %344 = vperm.xlu0 %343, %v334
      %v345 = vpop.permute.xlu0 %344
      %348 = vset.pattern.permute.xlu0 0
      %349 = vperm.xlu0 %348, %v335
      %v350 = vpop.permute.xlu0 %349
      %353 = vset.pattern.permute.xlu0 0
      %354 = vperm.xlu0 %353, %v336
      %v355 = vpop.permute.xlu0 %354
      %v357 = vmul.f32 %v315, %v340
      %v358 = vmul.f32 %v320, %v345
      %v359 = vmul.f32 %v325, %v350
      %v360 = vmul.f32 %v330, %v355
      %v361 = vld [vmem:[%s2] sm:$0xff]
      %v362 = vld [vmem:[%s2 + $0x8] sm:$0xff]
      %v363 = vld [vmem:[%s2 + $0x10] sm:$0xff]
      %v364 = vld [vmem:[%s2 + $0x18] sm:$0xff]
      %366 = vset.pattern.permute.xlu0 0
      %367 = vperm.xlu0 %366, %v361
      %v368 = vpop.permute.xlu0 %367
      %371 = vset.pattern.permute.xlu0 0
      %372 = vperm.xlu0 %371, %v362
      %v373 = vpop.permute.xlu0 %372
      %376 = vset.pattern.permute.xlu0 0
      %377 = vperm.xlu0 %376, %v363
      %v378 = vpop.permute.xlu0 %377
      %381 = vset.pattern.permute.xlu0 0
      %382 = vperm.xlu0 %381, %v364
      %v383 = vpop.permute.xlu0 %382
      %v385 = vadd.f32 %v357, %v368
      %v386 = vadd.f32 %v358, %v373
      %v387 = vadd.f32 %v359, %v378
      %v388 = vadd.f32 %v360, %v383
      %v389 = vmax.f32 %v385, 0.0
      %v390 = vmax.f32 %v386, 0.0
      %v391 = vmax.f32 %v387, 0.0
      %v392 = vmax.f32 %v388, 0.0
      %v393 = vpack.c.bf16 %v390, %v389
      %v394 = vunpack.c.l.bf16 %v393
      %v395 = vunpack.c.h.bf16 %v393
      %v398 = vpack.c.bf16 %v392, %v391
      %v399 = vunpack.c.l.bf16 %v398
      %v400 = vunpack.c.h.bf16 %v398
      %v403 = vshrl.u32 %v394, 16
      %v404 = vshrl.u32 %v395, 16
      %v405 = vor.u32 %v403, %v399
      %v406 = vor.u32 %v404, %v400
      %407 = vst [vmem:[%s228] sm:$0xff] %v405
      %408 = vst [vmem:[%s228 + $0x8] sm:$0xff] %v406
      %p409 = scmp.lt.s32.totalorder %s19, 1
      %s410 = scalar_select %p409, %s19, 1
      %p411 = scmp.lt.s32.totalorder %s20, 0
      %s412 = scalar_select %p411, %s20, 0
      %s413 = smul.addr %s410, 2
      %s414 = sadd.s32 %s412, %s413
      %s415 = smul.addr %s414, 8
      %s416 = scalar_lea.vmem %s4, %s415
      // Predicated region
      $region37: #{conv_bnt_relu.3} parent=35 // pred_check
        %p417 = pneg %p138
      $region38: #{conv_bnt_relu.3} parent=35 // pred_check_branch
        %419 = sbr.rel (%p417) target = $region40
      $region39: #{conv_bnt_relu.3} parent=35 // pred_region
        _
      $region40: #{conv_bnt_relu.3} parent=35 // pred_fallthru
        _
    $region36: #{conv_bnt_relu.3} parent=5 // pred_fallthru
      _
    %p420 = scmp.le.s32.totalorder 2, %s10
    // Predicated region
    $region41: #{conv_bnt_relu.3} parent=5 // pred_check
      %p421 = pneg %p420
    $region42: #{conv_bnt_relu.3} parent=5 // pred_check_branch
      %423 = sbr.rel (%p421) target = $region44
    $region43: #{conv_bnt_relu.3} parent=5 // pred_region
      %s424 = ssub.s32 %s10, 2
      // Predicated region
      $region45: #{conv_bnt_relu.3} parent=43 // pred_check
        %p425 = pneg %p144
      $region46: #{conv_bnt_relu.3} parent=43 // pred_check_branch
        %427 = sbr.rel (%p425) target = $region48
      $region47: #{conv_bnt_relu.3} parent=43 // pred_region
        %p428 = scmp.lt.s32.totalorder %s21, 1
        %s429 = scalar_select %p428, %s21, 1
        %p430 = scmp.lt.s32.totalorder %s22, 0
        %s431 = scalar_select %p430, %s22, 0
        %s432 = smul.addr %s429, 2
        %s433 = sadd.s32 %s431, %s432
        %s434 = smul.addr %s433, 8
        %s435 = scalar_lea.vmem %s4, %s434
      $region48: #{conv_bnt_relu.3} parent=43 // pred_fallthru
        _
    $region44: #{conv_bnt_relu.3} parent=5 // pred_fallthru
      _
  $region6: #{conv_bnt_relu.3} parent=0 // loop_footer
    %s14 = sadd.s32 1, %s10
  $region7: #{conv_bnt_relu.3} parent=0 // loop_footer_branch
    %9 = sbr.rel target = $region3
  $region8: #{conv_bnt_relu.3} parent=0 // loop_exit
    _

</llo_original>
